<compile_context>
chip_gen: v7x
topology: tpu7x:2x2x1
jax: 0.10.0
libtpu: 0.0.40
codegen_flags: <defaults>
</compile_context>

<pallas_src>
import functools

import jax
import jax.numpy as jnp
from jax.experimental import pallas as pl
from jax.experimental.pallas import tpu as pltpu

HIDDEN = 200         # fixed by the module definition
HIDDEN_PAD = 256     # lane-dense hidden width (multiple of 128)
VMEM_BUDGET = 24 << 20   # conservative; under the 32 MiB scoped default on every generation


def _round_up(x, m):
    return (x + m - 1) // m * m


def _softplus(x):
    # Matches torch.nn.Softplus(beta=1, threshold=20): linear above the threshold.
    return jnp.where(x > 20.0, x, jnp.log1p(jnp.exp(x)))


def _mlp_kernel(x_ref, w1_ref, b1_ref, w2_ref, b2_ref, w3_ref, b3_ref, o_ref):
    # x_ref: (bm, dim)      w1: (dim, 256)   b1: (1, 256)
    # w2:   (256, 256)      b2: (1, 256)
    # w3:   (1, 256) row    b3: (1, 1)
    # o_ref: (bm, 1)
    mm_dtype = w1_ref.dtype   # f32 (exact PyTorch match) or bf16 (fast path); f32 accumulation either way

    h = jnp.dot(x_ref[...].astype(mm_dtype), w1_ref[...],
                preferred_element_type=jnp.float32) + b1_ref[...]
    h = _softplus(h)

    h = jnp.dot(h.astype(mm_dtype), w2_ref[...],
                preferred_element_type=jnp.float32) + b2_ref[...]
    h = _softplus(h)

    # Final Linear(200->1): VPU multiply + lane reduce (XLU) instead of a 1-useful-column MXU pass.
    y = jnp.sum(h * w3_ref[...], axis=-1, keepdims=True) + b3_ref[...]
    o_ref[...] = y.astype(o_ref.dtype)


def _choose_bm(n, dim, block_m, x_bytes, w_bytes):
    """Batch tile: big by default, clamped for tiny batches, >=2 grid steps for v7x megacore,
    and capped so the estimated VMEM footprint stays within budget."""
    bm = max(8, min(_round_up(block_m, 8), _round_up(n, 8)))
    # v7x has 2 TensorCores; the parallel grid axis is the only thing sharding across them.
    if _round_up(n, 8) > 8:
        bm = min(bm, max(8, _round_up(pl.cdiv(n, 2), 8)))
    # VMEM estimate: double-buffered x tile + double-buffered out column + ~2 live f32
    # (bm, 256) activation slabs + double-buffered resident weights.
    weights = 2 * ((dim * HIDDEN_PAD + HIDDEN_PAD * HIDDEN_PAD) * w_bytes
                   + (3 * HIDDEN_PAD + 1) * 4)
    per_row = 2 * dim * x_bytes + 2 * 4 + 2 * HIDDEN_PAD * 4
    bm_vmem = max(8, (VMEM_BUDGET - weights) // per_row // 8 * 8)
    return min(bm, bm_vmem)


@functools.partial(jax.jit, static_argnames=("block_m", "use_bf16_matmul"))
def lipschitz_function_forward(x, params, block_m=2048, use_bf16_matmul=False):
    """Fused forward pass of LipschitzFunction.

    x: (N, dim) array, any float dtype (cast inside the kernel; module does x.float()).
    params: dict with w1 (dim,200), b1 (1,200), w2 (200,200), b2 (1,200),
            w3 (200,1), b3 (1,1) -- nn.Linear weights stored pre-transposed to (in, out).
    use_bf16_matmul: bf16 matmul operands with f32 accumulation (faster on every TPU
            generation; small deviation from the strict f32 reference).
    returns: (N, 1) float32
    """
    n, dim = x.shape
    f32 = jnp.float32
    mm_dtype = jnp.bfloat16 if use_bf16_matmul else f32

    bm = _choose_bm(n, dim, block_m,
                    jnp.dtype(x.dtype).itemsize, jnp.dtype(mm_dtype).itemsize)
    grid_m = pl.cdiv(n, bm)

    # Lane-dense zero padding of the hidden width only (200 -> 256). Padded hidden units become
    # softplus(0)=log(2) but hit exactly-zero rows of w2p/w3p, so the output is unchanged.
    w1p = jnp.zeros((dim, HIDDEN_PAD), f32).at[:, :HIDDEN].set(
        params["w1"].astype(f32)).astype(mm_dtype)
    b1p = jnp.zeros((1, HIDDEN_PAD), f32).at[:, :HIDDEN].set(
        params["b1"].astype(f32).reshape(1, HIDDEN))
    w2p = jnp.zeros((HIDDEN_PAD, HIDDEN_PAD), f32).at[:HIDDEN, :HIDDEN].set(
        params["w2"].astype(f32)).astype(mm_dtype)
    b2p = jnp.zeros((1, HIDDEN_PAD), f32).at[:, :HIDDEN].set(
        params["b2"].astype(f32).reshape(1, HIDDEN))
    w3p = jnp.zeros((1, HIDDEN_PAD), f32).at[:, :HIDDEN].set(
        params["w3"].astype(f32).reshape(1, HIDDEN))
    b3p = params["b3"].astype(f32).reshape(1, 1)

    # Constant index_map -> weight/bias blocks are DMA'd once and stay resident in VMEM.
    full = lambda shape: pl.BlockSpec(shape, lambda i, _nd=len(shape): (0,) * _nd)

    out = pl.pallas_call(
        _mlp_kernel,
        out_shape=jax.ShapeDtypeStruct((n, 1), f32),
        grid_spec=pltpu.PrefetchScalarGridSpec(
            num_scalar_prefetch=0,
            grid=(grid_m,),
            in_specs=[
                # x tile: last dim == full feature dim (legal even when dim % 128 != 0);
                # cdiv grid -> last block may be partial, which is safe here (see header).
                pl.BlockSpec((bm, dim), lambda i: (i, 0)),
                full(w1p.shape),
                full(b1p.shape),
                full(w2p.shape),
                full(b2p.shape),
                full(w3p.shape),
                full(b3p.shape),
            ],
            out_specs=pl.BlockSpec((bm, 1), lambda i: (i, 0)),
        ),
        compiler_params=pltpu.CompilerParams(
            # Batch axis is embarrassingly parallel -> shards across the 2 TCs on v7x.
            dimension_semantics=("parallel",),
        ),
    )(x, w1p, b1p, w2p, b2p, w3p, b3p)

    return out


def init_params(key, dim):
    """Deterministic synthetic params, mirroring nn.Linear shapes.

    PyTorch nn.Linear(in, out) stores weight (out, in); we keep the transposed (in, out)
    layout so the kernel computes x @ W + b directly. Init follows PyTorch's default
    U(-1/sqrt(fan_in), 1/sqrt(fan_in)).
    """
    ks = jax.random.split(key, 6)

    def linear(kw, kb, fan_in, fan_out):
        bound = 1.0 / jnp.sqrt(jnp.float32(fan_in))
        w = jax.random.uniform(kw, (fan_in, fan_out), jnp.float32, -bound, bound)
        b = jax.random.uniform(kb, (1, fan_out), jnp.float32, -bound, bound)
        return w, b

    w1, b1 = linear(ks[0], ks[1], dim, HIDDEN)
    w2, b2 = linear(ks[2], ks[3], HIDDEN, HIDDEN)
    w3, b3 = linear(ks[4], ks[5], HIDDEN, 1)
    return {"w1": w1, "b1": b1, "w2": w2, "b2": b2, "w3": w3, "b3": b3}


def _reference_forward(x, params):
    # Pure-JAX reference mirroring the PyTorch module exactly (unpadded weights, all f32).
    h = x.astype(jnp.float32) @ params["w1"] + params["b1"]
    h = _softplus(h)
    h = h @ params["w2"] + params["b2"]
    h = _softplus(h)
    return h @ params["w3"] + params["b3"]


if __name__ == "__main__":
    key = jax.random.PRNGKey(0)
    k_param, k_x = jax.random.split(key)

    dim = 32          # input feature dimension of LipschitzFunction(dim)
    batch = 20        # NOT a multiple of 8: exercises the partial-last-block + grid_m>=2 path

    params = init_params(k_param, dim)
    x = jax.random.normal(k_x, (batch, dim), jnp.float32)

    ref = _reference_forward(x, params)

    # Exact-semantics path (f32 matmuls, matches the PyTorch module).
    out = jax.block_until_ready(lipschitz_function_forward(x, params))
    assert out.shape == (batch, 1)
    assert jnp.allclose(out, ref, atol=1e-4, rtol=1e-4), "f32 path mismatch vs reference"

    # Fast path (bf16 matmul operands, f32 accumulation) -- looser tolerance.
    out_bf16 = jax.block_until_ready(
        lipschitz_function_forward(x, params, use_bf16_matmul=True))
    assert out_bf16.shape == (batch, 1)
    assert jnp.allclose(out_bf16, ref, atol=5e-2, rtol=5e-2), "bf16 path mismatch vs reference"

    print("KERNEL_OK")
</pallas_src>

<mosaic_0001>
module attributes {stable_mosaic.version = 11 : i64} {
  func.func @_mlp_kernel(%arg0: i32, %arg1: memref<16x32xf32, #tpu.memory_space<vmem>>, %arg2: memref<32x256xf32, #tpu.memory_space<vmem>>, %arg3: memref<1x256xf32, #tpu.memory_space<vmem>>, %arg4: memref<256x256xf32, #tpu.memory_space<vmem>>, %arg5: memref<1x256xf32, #tpu.memory_space<vmem>>, %arg6: memref<1x256xf32, #tpu.memory_space<vmem>>, %arg7: memref<1x1xf32, #tpu.memory_space<vmem>>, %arg8: memref<16x1xf32, #tpu.memory_space<vmem>>) attributes {dimension_semantics = [#tpu.dimension_semantics<parallel>], iteration_bounds = array<i64: 2>, scalar_prefetch = 0 : i64, scratch_operands = 0 : i64, tpu.core_type = #tpu.core_type<tc>, window_params = [{transform_indices = @transform_0, window_bounds = array<i64: 16, 32>}, {pipeline_mode = #tpu.pipeline_mode<synchronous>, transform_indices = @transform_1, window_bounds = array<i64: 32, 256>}, {pipeline_mode = #tpu.pipeline_mode<synchronous>, transform_indices = @transform_2, window_bounds = array<i64: 1, 256>}, {pipeline_mode = #tpu.pipeline_mode<synchronous>, transform_indices = @transform_3, window_bounds = array<i64: 256, 256>}, {pipeline_mode = #tpu.pipeline_mode<synchronous>, transform_indices = @transform_4, window_bounds = array<i64: 1, 256>}, {pipeline_mode = #tpu.pipeline_mode<synchronous>, transform_indices = @transform_5, window_bounds = array<i64: 1, 256>}, {pipeline_mode = #tpu.pipeline_mode<synchronous>, transform_indices = @transform_6, window_bounds = array<i64: 1, 1>}, {transform_indices = @transform_7, window_bounds = array<i64: 16, 1>}]} {
    %c0 = arith.constant 0 : index
    %c0_0 = arith.constant 0 : index
    %0 = vector.load %arg1[%c0, %c0_0] : memref<16x32xf32, #tpu.memory_space<vmem>>, vector<16x32xf32>
    %c0_1 = arith.constant 0 : index
    %c0_2 = arith.constant 0 : index
    %1 = vector.load %arg2[%c0_1, %c0_2] : memref<32x256xf32, #tpu.memory_space<vmem>>, vector<32x256xf32>
    %cst = arith.constant dense<0.000000e+00> : vector<16x256xf32>
    %2 = tpu.matmul %0, %1, %cst {dimension_numbers = #tpu.dot_dimension_numbers<[1], [0], [0], [1], [0, 0, 1, 1], [], []>} : vector<16x32xf32>, vector<32x256xf32>, vector<16x256xf32> -> vector<16x256xf32>
    %c0_3 = arith.constant 0 : index
    %c0_4 = arith.constant 0 : index
    %3 = vector.load %arg3[%c0_3, %c0_4] : memref<1x256xf32, #tpu.memory_space<vmem>>, vector<1x256xf32>
    %4 = vector.broadcast %3 : vector<1x256xf32> to vector<16x256xf32>
    %5 = arith.addf %2, %4 : vector<16x256xf32>
    %cst_5 = arith.constant 2.000000e+01 : f32
    %6 = vector.broadcast %cst_5 : f32 to vector<16x256xf32>
    %7 = arith.cmpf ogt, %5, %6 : vector<16x256xf32>
    %8 = math.exp %5 : vector<16x256xf32>
    %9 = math.log1p %8 : vector<16x256xf32>
    %10 = arith.select %7, %5, %9 : vector<16x256xi1>, vector<16x256xf32>
    %c0_6 = arith.constant 0 : index
    %c0_7 = arith.constant 0 : index
    %11 = vector.load %arg4[%c0_6, %c0_7] : memref<256x256xf32, #tpu.memory_space<vmem>>, vector<256x256xf32>
    %cst_8 = arith.constant dense<0.000000e+00> : vector<16x256xf32>
    %12 = tpu.matmul %10, %11, %cst_8 {dimension_numbers = #tpu.dot_dimension_numbers<[1], [0], [0], [1], [0, 0, 1, 1], [], []>} : vector<16x256xf32>, vector<256x256xf32>, vector<16x256xf32> -> vector<16x256xf32>
    %c0_9 = arith.constant 0 : index
    %c0_10 = arith.constant 0 : index
    %13 = vector.load %arg5[%c0_9, %c0_10] : memref<1x256xf32, #tpu.memory_space<vmem>>, vector<1x256xf32>
    %14 = vector.broadcast %13 : vector<1x256xf32> to vector<16x256xf32>
    %15 = arith.addf %12, %14 : vector<16x256xf32>
    %cst_11 = arith.constant 2.000000e+01 : f32
    %16 = vector.broadcast %cst_11 : f32 to vector<16x256xf32>
    %17 = arith.cmpf ogt, %15, %16 : vector<16x256xf32>
    %18 = math.exp %15 : vector<16x256xf32>
    %19 = math.log1p %18 : vector<16x256xf32>
    %20 = arith.select %17, %15, %19 : vector<16x256xi1>, vector<16x256xf32>
    %c0_12 = arith.constant 0 : index
    %c0_13 = arith.constant 0 : index
    %21 = vector.load %arg6[%c0_12, %c0_13] : memref<1x256xf32, #tpu.memory_space<vmem>>, vector<1x256xf32>
    %22 = vector.broadcast %21 : vector<1x256xf32> to vector<16x256xf32>
    %23 = arith.mulf %20, %22 : vector<16x256xf32>
    %cst_14 = arith.constant dense<0.000000e+00> : vector<16xf32>
    %24 = vector.multi_reduction <add>, %23, %cst_14 [1] : vector<16x256xf32> to vector<16xf32>
    %25 = vector.shape_cast %24 : vector<16xf32> to vector<16x1xf32>
    %c0_15 = arith.constant 0 : index
    %c0_16 = arith.constant 0 : index
    %26 = vector.load %arg7[%c0_15, %c0_16] : memref<1x1xf32, #tpu.memory_space<vmem>>, vector<1x1xf32>
    %27 = vector.broadcast %26 : vector<1x1xf32> to vector<16x1xf32>
    %28 = arith.addf %25, %27 : vector<16x1xf32>
    %c0_17 = arith.constant 0 : index
    %c0_18 = arith.constant 0 : index
    %29 = vector.load %arg8[%c0_17, %c0_18] : memref<16x1xf32, #tpu.memory_space<vmem>>, vector<16x1xf32>
    tpu.vector_store %arg8[%c0_17, %c0_18], %28 {strides = array<i32>} : memref<16x1xf32, #tpu.memory_space<vmem>>, vector<16x1xf32>,
    return
  }
  func.func @transform_0(%arg0: i32) -> (i32, i32) {
    %c0_i32 = arith.constant 0 : i32
    %c0_i32_0 = arith.constant 0 : i32
    return %arg0, %c0_i32 : i32, i32
  }
  func.func @transform_1(%arg0: i32) -> (i32, i32) {
    %c0_i32 = arith.constant 0 : i32
    %c0_i32_0 = arith.constant 0 : i32
    %c0_i32_1 = arith.constant 0 : i32
    return %c0_i32, %c0_i32_0 : i32, i32
  }
  func.func @transform_2(%arg0: i32) -> (i32, i32) {
    %c0_i32 = arith.constant 0 : i32
    %c0_i32_0 = arith.constant 0 : i32
    %c0_i32_1 = arith.constant 0 : i32
    return %c0_i32, %c0_i32_0 : i32, i32
  }
  func.func @transform_3(%arg0: i32) -> (i32, i32) {
    %c0_i32 = arith.constant 0 : i32
    %c0_i32_0 = arith.constant 0 : i32
    %c0_i32_1 = arith.constant 0 : i32
    return %c0_i32, %c0_i32_0 : i32, i32
  }
  func.func @transform_4(%arg0: i32) -> (i32, i32) {
    %c0_i32 = arith.constant 0 : i32
    %c0_i32_0 = arith.constant 0 : i32
    %c0_i32_1 = arith.constant 0 : i32
    return %c0_i32, %c0_i32_0 : i32, i32
  }
  func.func @transform_5(%arg0: i32) -> (i32, i32) {
    %c0_i32 = arith.constant 0 : i32
    %c0_i32_0 = arith.constant 0 : i32
    %c0_i32_1 = arith.constant 0 : i32
    return %c0_i32, %c0_i32_0 : i32, i32
  }
  func.func @transform_6(%arg0: i32) -> (i32, i32) {
    %c0_i32 = arith.constant 0 : i32
    %c0_i32_0 = arith.constant 0 : i32
    %c0_i32_1 = arith.constant 0 : i32
    return %c0_i32, %c0_i32_0 : i32, i32
  }
  func.func @transform_7(%arg0: i32) -> (i32, i32) {
    %c0_i32 = arith.constant 0 : i32
    %c0_i32_0 = arith.constant 0 : i32
    return %arg0, %c0_i32 : i32, i32
  }
}

</mosaic_0001>

<llo_original>
// kernel: lipschitz_function_forward.1
$region0: #{lipschitz_function_forward.1}
  #allocation0 [shape = 'u32[]', space=smem, size = 0x4, offset = 0x4, fixed_abs, tag = 'smem constant byte address 0x4 - core index']
  #allocation1 [shape = 'u32[144,128]{1,0:T(1,128)}', space=vmem, size = 0x12000, scoped, tag = 'internal scratch']
  #allocation2 [shape = 'f32[1,1]{1,0:T(1,128)S(1)}', space=vmem, size = 0x200, scoped, tag = 'scoped memory for lipschitz_function_forward.1']
  %s0 = inlined_call_operand.vmem [shape: f32[20,32], index: 0, kind: input, shape index: {}]
  %s1 = inlined_call_operand.vmem [shape: f32[32,256], index: 1, kind: input, shape index: {}]
  %s2 = inlined_call_operand.vmem [shape: f32[1,256], index: 2, kind: input, shape index: {}]
  %s3 = inlined_call_operand.vmem [shape: f32[256,256], index: 3, kind: input, shape index: {}]
  %s4 = inlined_call_operand.vmem [shape: f32[1,256], index: 4, kind: input, shape index: {}]
  %s5 = inlined_call_operand.vmem [shape: f32[1,256], index: 5, kind: input, shape index: {}]
  %s6 = inlined_call_operand.<no memory space> [shape: f32[1,1], index: 6, kind: input, shape index: {}]
  %s7 = inlined_call_operand.vmem [shape: f32[20,1], index: 7, kind: output, shape index: {}]
  %s8 = sld [smem:[#allocation0]]
  $region109: #{lipschitz_function_forward.1} parent=0
    _
  %s10 = ssub.s32 1, %s8
  %s11 = scalar_select 0, %s10, %s8
  %v12 = vstv %s6
  %13 = vst [vmem:[#allocation2] sm:$0x1] %v12
  $region1: #{lipschitz_function_forward.1} parent=0
    #allocation3 [shape = 'u8[16384]{0}', space=vmem, size = 0x4000, scoped, tag = 'output window, operand 0']
    loop: start=0, step=1, limit=4
    $region2: #{lipschitz_function_forward.1} parent=1 // loop_pre_header
      _
    $region3: #{lipschitz_function_forward.1} parent=1 // loop_header
      %s15 = sphi 0, %s19
      %p16 = scmp.ge.s32.totalorder %s15, 4
      %s25 = sphi 0, %s27
      %s28 = sphi 0, %s25
      %s29 = sphi 0, %s28
      %s45 = sphi 0, %s29
      %s49 = sphi 0, %s49
      %s51 = sphi 0, %s49
      %s52 = sphi 0, %s51
      %s66 = sphi 0, %s52
      %s70 = sphi 0, %s70
      %s72 = sphi 0, %s70
      %s73 = sphi 0, %s72
      %s87 = sphi 0, %s73
      %s91 = sphi 0, %s91
      %s93 = sphi 0, %s91
      %s94 = sphi 0, %s93
      %s108 = sphi 0, %s94
      %s112 = sphi 0, %s112
      %s114 = sphi 0, %s112
      %s115 = sphi 0, %s114
      %s129 = sphi 0, %s115
      %s133 = sphi 0, %s133
      %s135 = sphi 0, %s133
      %s136 = sphi 0, %s135
      %s150 = sphi 0, %s136
      %s154 = sphi 0, %s154
      %s156 = sphi 0, %s154
      %s157 = sphi 0, %s156
      %s171 = sphi 0, %s157
      %s177 = sphi 0, %s179
      %s180 = sphi 0, %s177
      %s181 = sphi 0, %s180
      %s197 = sphi 0, %s181
    $region4: #{lipschitz_function_forward.1} parent=1 // loop_header_branch
      %18 = sbr.rel (%p16) target = $region8
    $region5: #{lipschitz_function_forward.1} parent=1 // loop_body
      %s20 = ssub.s32 %s15, 1
      %s21 = ssub.s32 %s15, 2
      %s22 = sadd.s32 %s15, 1
      %s23 = ssub.s32 %s15, %s22
      %p24 = scmp.eq.s32.totalorder %s23, 0
      %s26 = sadd.s32 %s25, 1
      %s27 = scalar_select %p24, %s25, %s26
      %p30 = pneg %p24
      %p31 = scmp.eq.s32.totalorder %s15, 1
      %p32 = por %p30, %p31
      %p33 = scmp.ne.s32.totalorder %s25, %s28
      %p34 = scmp.eq.s32.totalorder %s15, 0
      %p35 = por %p33, %p34
      %p36 = scmp.ne.s32.totalorder %s25, %s28
      %p37 = scmp.eq.s32.totalorder %s20, 1
      %p38 = por %p36, %p37
      %p39 = scmp.ne.s32.totalorder %s28, %s29
      %p40 = scmp.eq.s32.totalorder %s20, 0
      %p41 = por %p39, %p40
      %p42 = scmp.ne.s32.totalorder %s28, %s29
      %p43 = scmp.eq.s32.totalorder %s21, 1
      %p44 = por %p42, %p43
      %p46 = scmp.ne.s32.totalorder %s29, %s45
      %p47 = scmp.eq.s32.totalorder %s21, 0
      %p48 = por %p46, %p47
      %s50 = sadd.s32 %s49, 1
      %p53 = scmp.eq.s32.totalorder %s15, 1
      %p54 = scmp.ne.s32.totalorder %s49, %s51
      %p55 = scmp.eq.s32.totalorder %s15, 0
      %p56 = por %p54, %p55
      %p57 = scmp.ne.s32.totalorder %s49, %s51
      %p58 = scmp.eq.s32.totalorder %s20, 1
      %p59 = por %p57, %p58
      %p60 = scmp.ne.s32.totalorder %s51, %s52
      %p61 = scmp.eq.s32.totalorder %s20, 0
      %p62 = por %p60, %p61
      %p63 = scmp.ne.s32.totalorder %s51, %s52
      %p64 = scmp.eq.s32.totalorder %s21, 1
      %p65 = por %p63, %p64
      %p67 = scmp.ne.s32.totalorder %s52, %s66
      %p68 = scmp.eq.s32.totalorder %s21, 0
      %p69 = por %p67, %p68
      %s71 = sadd.s32 %s70, 1
      %p74 = scmp.eq.s32.totalorder %s15, 1
      %p75 = scmp.ne.s32.totalorder %s70, %s72
      %p76 = scmp.eq.s32.totalorder %s15, 0
      %p77 = por %p75, %p76
      %p78 = scmp.ne.s32.totalorder %s70, %s72
      %p79 = scmp.eq.s32.totalorder %s20, 1
      %p80 = por %p78, %p79
      %p81 = scmp.ne.s32.totalorder %s72, %s73
      %p82 = scmp.eq.s32.totalorder %s20, 0
      %p83 = por %p81, %p82
      %p84 = scmp.ne.s32.totalorder %s72, %s73
      %p85 = scmp.eq.s32.totalorder %s21, 1
      %p86 = por %p84, %p85
      %p88 = scmp.ne.s32.totalorder %s73, %s87
      %p89 = scmp.eq.s32.totalorder %s21, 0
      %p90 = por %p88, %p89
      %s92 = sadd.s32 %s91, 1
      %p95 = scmp.eq.s32.totalorder %s15, 1
      %p96 = scmp.ne.s32.totalorder %s91, %s93
      %p97 = scmp.eq.s32.totalorder %s15, 0
      %p98 = por %p96, %p97
      %p99 = scmp.ne.s32.totalorder %s91, %s93
      %p100 = scmp.eq.s32.totalorder %s20, 1
      %p101 = por %p99, %p100
      %p102 = scmp.ne.s32.totalorder %s93, %s94
      %p103 = scmp.eq.s32.totalorder %s20, 0
      %p104 = por %p102, %p103
      %p105 = scmp.ne.s32.totalorder %s93, %s94
      %p106 = scmp.eq.s32.totalorder %s21, 1
      %p107 = por %p105, %p106
      %p109 = scmp.ne.s32.totalorder %s94, %s108
      %p110 = scmp.eq.s32.totalorder %s21, 0
      %p111 = por %p109, %p110
      %s113 = sadd.s32 %s112, 1
      %p116 = scmp.eq.s32.totalorder %s15, 1
      %p117 = scmp.ne.s32.totalorder %s112, %s114
      %p118 = scmp.eq.s32.totalorder %s15, 0
      %p119 = por %p117, %p118
      %p120 = scmp.ne.s32.totalorder %s112, %s114
      %p121 = scmp.eq.s32.totalorder %s20, 1
      %p122 = por %p120, %p121
      %p123 = scmp.ne.s32.totalorder %s114, %s115
      %p124 = scmp.eq.s32.totalorder %s20, 0
      %p125 = por %p123, %p124
      %p126 = scmp.ne.s32.totalorder %s114, %s115
      %p127 = scmp.eq.s32.totalorder %s21, 1
      %p128 = por %p126, %p127
      %p130 = scmp.ne.s32.totalorder %s115, %s129
      %p131 = scmp.eq.s32.totalorder %s21, 0
      %p132 = por %p130, %p131
      %s134 = sadd.s32 %s133, 1
      %p137 = scmp.eq.s32.totalorder %s15, 1
      %p138 = scmp.ne.s32.totalorder %s133, %s135
      %p139 = scmp.eq.s32.totalorder %s15, 0
      %p140 = por %p138, %p139
      %p141 = scmp.ne.s32.totalorder %s133, %s135
      %p142 = scmp.eq.s32.totalorder %s20, 1
      %p143 = por %p141, %p142
      %p144 = scmp.ne.s32.totalorder %s135, %s136
      %p145 = scmp.eq.s32.totalorder %s20, 0
      %p146 = por %p144, %p145
      %p147 = scmp.ne.s32.totalorder %s135, %s136
      %p148 = scmp.eq.s32.totalorder %s21, 1
      %p149 = por %p147, %p148
      %p151 = scmp.ne.s32.totalorder %s136, %s150
      %p152 = scmp.eq.s32.totalorder %s21, 0
      %p153 = por %p151, %p152
      %s155 = sadd.s32 %s154, 1
      %p158 = scmp.eq.s32.totalorder %s15, 1
      %p159 = scmp.ne.s32.totalorder %s154, %s156
      %p160 = scmp.eq.s32.totalorder %s15, 0
      %p161 = por %p159, %p160
      %p162 = scmp.ne.s32.totalorder %s154, %s156
      %p163 = scmp.eq.s32.totalorder %s20, 1
      %p164 = por %p162, %p163
      %p165 = scmp.ne.s32.totalorder %s156, %s157
      %p166 = scmp.eq.s32.totalorder %s20, 0
      %p167 = por %p165, %p166
      %p168 = scmp.ne.s32.totalorder %s156, %s157
      %p169 = scmp.eq.s32.totalorder %s21, 1
      %p170 = por %p168, %p169
      %p172 = scmp.ne.s32.totalorder %s157, %s171
      %p173 = scmp.eq.s32.totalorder %s21, 0
      %p174 = por %p172, %p173
      %s175 = ssub.s32 %s15, %s22
      %p176 = scmp.eq.s32.totalorder %s175, 0
      %s178 = sadd.s32 %s177, 1
      %s179 = scalar_select %p176, %s177, %s178
      %p182 = pneg %p176
      %p183 = scmp.eq.s32.totalorder %s15, 1
      %p184 = por %p182, %p183
      %p185 = scmp.ne.s32.totalorder %s177, %s180
      %p186 = scmp.eq.s32.totalorder %s15, 0
      %p187 = por %p185, %p186
      %p188 = scmp.ne.s32.totalorder %s177, %s180
      %p189 = scmp.eq.s32.totalorder %s20, 1
      %p190 = por %p188, %p189
      %p191 = scmp.ne.s32.totalorder %s180, %s181
      %p192 = scmp.eq.s32.totalorder %s20, 0
      %p193 = por %p191, %p192
      %p194 = scmp.ne.s32.totalorder %s180, %s181
      %p195 = scmp.eq.s32.totalorder %s21, 1
      %p196 = por %p194, %p195
      %p198 = scmp.ne.s32.totalorder %s181, %s197
      %p199 = scmp.eq.s32.totalorder %s21, 0
      %p200 = por %p198, %p199
      %p201 = scmp.le.s32.totalorder 1, %s15
      %p202 = scmp.lt.s32.totalorder %s15, 3
      %p203 = pnand %p201, %p202
      %p204 = pneg %p203
      // Predicated region
      $region9: #{lipschitz_function_forward.1} parent=5 // pred_check
        _
      $region10: #{lipschitz_function_forward.1} parent=5 // pred_check_branch
        %206 = sbr.rel (%p203) target = $region12
      $region11: #{lipschitz_function_forward.1} parent=5 // pred_region
        %s207 = ssub.s32 %s15, 1
        // Predicated region
        $region13: #{lipschitz_function_forward.1} parent=11 // pred_check
          %p208 = pneg %p62
        $region14: #{lipschitz_function_forward.1} parent=11 // pred_check_branch
          %210 = sbr.rel (%p208) target = $region16
        $region15: #{lipschitz_function_forward.1} parent=11 // pred_region
          _
        $region16: #{lipschitz_function_forward.1} parent=11 // pred_fallthru
          _
        // Predicated region
        $region17: #{lipschitz_function_forward.1} parent=11 // pred_check
          %p211 = pneg %p83
        $region18: #{lipschitz_function_forward.1} parent=11 // pred_check_branch
          %213 = sbr.rel (%p211) target = $region20
        $region19: #{lipschitz_function_forward.1} parent=11 // pred_region
          _
        $region20: #{lipschitz_function_forward.1} parent=11 // pred_fallthru
          _
        // Predicated region
        $region21: #{lipschitz_function_forward.1} parent=11 // pred_check
          %p214 = pneg %p104
        $region22: #{lipschitz_function_forward.1} parent=11 // pred_check_branch
          %216 = sbr.rel (%p214) target = $region24
        $region23: #{lipschitz_function_forward.1} parent=11 // pred_region
          _
        $region24: #{lipschitz_function_forward.1} parent=11 // pred_fallthru
          _
        // Predicated region
        $region25: #{lipschitz_function_forward.1} parent=11 // pred_check
          %p217 = pneg %p125
        $region26: #{lipschitz_function_forward.1} parent=11 // pred_check_branch
          %219 = sbr.rel (%p217) target = $region28
        $region27: #{lipschitz_function_forward.1} parent=11 // pred_region
          _
        $region28: #{lipschitz_function_forward.1} parent=11 // pred_fallthru
          _
        // Predicated region
        $region29: #{lipschitz_function_forward.1} parent=11 // pred_check
          %p220 = pneg %p146
        $region30: #{lipschitz_function_forward.1} parent=11 // pred_check_branch
          %222 = sbr.rel (%p220) target = $region32
        $region31: #{lipschitz_function_forward.1} parent=11 // pred_region
          _
        $region32: #{lipschitz_function_forward.1} parent=11 // pred_fallthru
          _
        // Predicated region
        $region33: #{lipschitz_function_forward.1} parent=11 // pred_check
          %p223 = pneg %p167
        $region34: #{lipschitz_function_forward.1} parent=11 // pred_check_branch
          %225 = sbr.rel (%p223) target = $region36
        $region35: #{lipschitz_function_forward.1} parent=11 // pred_region
          _
        $region36: #{lipschitz_function_forward.1} parent=11 // pred_fallthru
          _
      $region12: #{lipschitz_function_forward.1} parent=5 // pred_fallthru
        _
      %p226 = scmp.lt.s32.totalorder %s15, 2
      // Predicated region
      $region37: #{lipschitz_function_forward.1} parent=5 // pred_check
        %p227 = pneg %p226
      $region38: #{lipschitz_function_forward.1} parent=5 // pred_check_branch
        %229 = sbr.rel (%p227) target = $region40
      $region39: #{lipschitz_function_forward.1} parent=5 // pred_region
        // Predicated region
        $region41: #{lipschitz_function_forward.1} parent=39 // pred_check
          %p230 = pneg %p35
        $region42: #{lipschitz_function_forward.1} parent=39 // pred_check_branch
          %232 = sbr.rel (%p230) target = $region44
        $region43: #{lipschitz_function_forward.1} parent=39 // pred_region
          %s233 = smul.u32 2, %s15
          %s234 = ssub.s32 3, %s233
          %p235 = scmp.lt.s32.totalorder %s234, 2
          %s236 = scalar_select %p235, %s234, 2
          %s237 = smul.u32 128, %s236
          %p238 = scmp.lt.s32.totalorder %s233, 2
          %s239 = scalar_select %p238, %s233, 2
          %s240 = smul.addr %s239, 8
          %s241 = scalar_lea.vmem %s0, %s240
          %s242 = smul.u32 2, %s15
          %s243 = ssub.s32 3, %s242
          %p244 = scmp.lt.s32.totalorder %s243, 2
          %s245 = scalar_select %p244, %s243, 2
          %s246 = smul.u32 128, %s245
        $region44: #{lipschitz_function_forward.1} parent=39 // pred_fallthru
          _
      $region40: #{lipschitz_function_forward.1} parent=5 // pred_fallthru
        _
      %p247 = scmp.le.s32.totalorder 1, %s15
      %p248 = scmp.lt.s32.totalorder %s15, 3
      %p249 = pnand %p247, %p248
      %p250 = pneg %p249
      // Predicated region
      $region45: #{lipschitz_function_forward.1} parent=5 // pred_check
        _
      $region46: #{lipschitz_function_forward.1} parent=5 // pred_check_branch
        %252 = sbr.rel (%p249) target = $region48
      $region47: #{lipschitz_function_forward.1} parent=5 // pred_region
        %s253 = ssub.s32 %s15, 1
        %s254 = smul.u32 2, %s20
        %s255 = ssub.s32 3, %s254
        %p256 = scmp.lt.s32.totalorder %s255, 2
        %s257 = scalar_select %p256, %s255, 2
        %s258 = smul.u32 128, %s257
        %p259 = scmp.lt.s32.totalorder %s254, 2
        %s260 = scalar_select %p259, %s254, 2
        %s261 = smul.addr %s260, 8
        %s262 = scalar_lea.vmem %s0, %s261
        %p263 = pneg %p41
        %p264 = pneg %p38
        %p265 = pneg %p62
        %p266 = pneg %p59
        %p267 = pneg %p83
        %p268 = pneg %p80
        %p269 = pneg %p104
        %p270 = pneg %p101
        %p271 = pneg %p125
        %p272 = pneg %p122
        %p273 = pneg %p146
        %p274 = pneg %p143
        %p275 = pneg %p167
        %p276 = pneg %p164
        %p277 = pneg %p193
        %p278 = pneg %p190
        %s279 = sand.u32 %s180, 1
        %s280 = sand.u32 %s180, 1
        %s281 = smul.addr %s280, 16
        %s282 = scalar_lea.vmem [#allocation3], %s281
        %s283 = smul.u32 2, %s20
        %s284 = ssub.s32 3, %s283
        %p285 = scmp.lt.s32.totalorder %s284, 2
        %s286 = scalar_select %p285, %s284, 2
        %s287 = smul.u32 128, %s286
        %p288 = scmp.lt.s32.totalorder %s283, 2
        %s289 = scalar_select %p288, %s283, 2
        %s290 = smul.addr %s289, 8
        %s291 = scalar_lea.vmem %s0, %s290
        %s292 = smul.u32 2, %s20
        %s293 = ssub.s32 3, %s292
        %p294 = scmp.lt.s32.totalorder %s293, 2
        %s295 = scalar_select %p294, %s293, 2
        %s296 = smul.u32 128, %s295
        %s297 = smul.u32 2, %s20
        %s298 = ssub.s32 3, %s297
        %p299 = scmp.lt.s32.totalorder %s298, 2
        %s300 = scalar_select %p299, %s298, 2
        %s301 = smul.u32 128, %s300
        %v302 = vld [vmem:[%s291] sm:$0xff]
        %v303 = vld [vmem:[%s291 + $0x8] sm:$0xff]
        %v304 = vld [vmem:[%s1] sm:$0xff]
        %v305 = vld [vmem:[%s1 + $0x8] sm:$0xff]
        %v306 = vld [vmem:[%s1 + $0x10] sm:$0xff]
        %v307 = vld [vmem:[%s1 + $0x18] sm:$0xff]
        %v308 = vld [vmem:[%s1 + $0x20] sm:$0xff]
        %v309 = vld [vmem:[%s1 + $0x28] sm:$0xff]
        %v310 = vld [vmem:[%s1 + $0x30] sm:$0xff]
        %v311 = vld [vmem:[%s1 + $0x38] sm:$0xff]
        %v312 = vld [vmem:[%s2] sm:$0x3]
        %v314 = vlaneseq
        %v315 = vshrl.u32 %v314, 7
        %v316 = vsub.s32 0, %v315
        %v317 = vrot.slane %v312, %v316
        %v318 = vlaneseq
        %v319 = vshrl.u32 %v318, 7
        %v320 = vsub.s32 1, %v319
        %v321 = vrot.slane %v312, %v320
        %vm324 = vcmask 261120
        %v326 = vsel %vm324, %v302, 0
        %v329 = vsel %vm324, %v303, 0
        %331 = vmatprep.subr.mxu0 %v305
        %332 = vmatpush1.msra.mxu0 %v304
        %333 = vmatprep.subr.mxu0 %v307
        %334 = vmatpush1.msra.mxu0 %v306
        %335 = vmatprep.subr.mxu0 %v309
        %336 = vmatpush1.msra.mxu0 %v308
        %337 = vmatprep.subr.mxu0 %v311
        %338 = vmatpush1.msra.mxu0 %v310
        %339 = vmatprep.subr.mxu0 0.0
        %340 = vmatpush1.msra.mxu0 0.0
        %341 = vmatprep.subr.mxu0 0.0
        %342 = vmatpush1.msra.mxu0 0.0
        %343 = vmatprep.subr.mxu0 0.0
        %344 = vmatpush1.msra.mxu0 0.0
        %345 = vmatprep.subr.mxu0 0.0
        %346 = vmatpush1.msra.mxu0 0.0
        %347 = vmatprep.subr.mxu0 0.0
        %348 = vmatpush1.msra.mxu0 0.0
        %349 = vmatprep.subr.mxu0 0.0
        %350 = vmatpush1.msra.mxu0 0.0
        %351 = vmatprep.subr.mxu0 0.0
        %352 = vmatpush1.msra.mxu0 0.0
        %353 = vmatprep.subr.mxu0 0.0
        %354 = vmatpush1.msra.mxu0 0.0
        %355 = vmatprep.subr.mxu0 0.0
        %356 = vmatpush1.msra.mxu0 0.0
        %357 = vmatprep.subr.mxu0 0.0
        %358 = vmatpush1.msra.mxu0 0.0
        %359 = vmatprep.subr.mxu0 0.0
        %360 = vmatpush1.msra.mxu0 0.0
        %361 = vmatprep.subr.mxu0 0.0
        %362 = vmatpush1.msra.mxu0 0.0
        %363 = vmatprep.subr.mxu0 0.0
        %364 = vmatpush1.msra.mxu0 0.0
        %365 = vmatprep.subr.mxu0 0.0
        %366 = vmatpush1.msra.mxu0 0.0
        %367 = vmatprep.subr.mxu0 0.0
        %368 = vmatpush1.msra.mxu0 0.0
        %369 = vmatprep.subr.mxu0 0.0
        %370 = vmatpush1.msra.mxu0 0.0
        %371 = vmatprep.subr.mxu0 0.0
        %372 = vmatpush1.msra.mxu0 0.0
        %373 = vmatprep.subr.mxu0 0.0
        %374 = vmatpush1.msra.mxu0 0.0
        %375 = vmatprep.subr.mxu0 0.0
        %376 = vmatpush1.msra.mxu0 0.0
        %377 = vmatprep.subr.mxu0 0.0
        %378 = vmatpush1.msra.mxu0 0.0
        %379 = vmatprep.subr.mxu0 0.0
        %380 = vmatpush1.msra.mxu0 0.0
        %381 = vmatprep.subr.mxu0 0.0
        %382 = vmatpush1.msra.mxu0 0.0
        %383 = vmatprep.subr.mxu0 0.0
        %384 = vmatpush1.msra.mxu0 0.0
        %385 = vmatprep.subr.mxu0 0.0
        %386 = vmatpush1.msra.mxu0 0.0
        %387 = vmatprep.subr.mxu0 0.0
        %388 = vmatpush1.msra.mxu0 0.0
        %389 = vmatprep.subr.mxu0 0.0
        %390 = vmatpush1.msra.mxu0 0.0
        %391 = vmatprep.subr.mxu0 0.0
        %392 = vmatpush1.msra.mxu0 0.0
        %393 = vmatprep.subr.mxu0 0.0
        %394 = vmatpush1.msra.mxu0 0.0
        %395 = vmatprep.mubr.f32.mxu0 0.0
        %396 = vmatmul.mubr.f32.gmra.mrb[0].mxu0 %v326
        %v397 = vpop.f32.mrb[0].mxu0
        %v398 = vadd.f32 %v317, %v397
        %v399 = vpop.f32.mrb[0].mxu0
        %v400 = vadd.f32 %v321, %v399
        %401 = vmatprep.mubr.f32.mxu0 0.0
        %402 = vmatmul.mubr.f32.gmra.mrb[0].mxu0 %v329
        %v403 = vpop.f32.mrb[0].mxu0
        %v404 = vadd.f32 %v317, %v403
        %v405 = vpop.f32.mrb[0].mxu0
        %v406 = vadd.f32 %v321, %v405
        %407 = vdwg.mxu0
        %vm408 = vcmp.gt.f32.partialorder %v398, 20.0
        %vm409 = vcmp.gt.f32.partialorder %v400, 20.0
        %vm410 = vcmp.gt.f32.partialorder %v404, 20.0
        %vm411 = vcmp.gt.f32.partialorder %v406, 20.0
        %v412 = vmul.f32 %v398, 1.442695
        %v413 = vpow.pop %v412
        %v414 = vmul.f32 %v400, 1.442695
        %v415 = vpow.pop %v414
        %v416 = vmul.f32 %v404, 1.442695
        %v417 = vpow.pop %v416
        %v418 = vmul.f32 %v406, 1.442695
        %v419 = vpow.pop %v418
        %v420 = vadd.f32 %v413, 1.0
        %v421 = vlog2.pop %v420
        %v422 = vmul.f32 %v421, 0.6931472
        %v423 = vmul.f32 -0.5, %v413
        %v424 = vadd.f32 %v423, 1.0
        %v425 = vmul.f32 %v424, %v413
        %v426 = vand.u32 2147483647, %v413
        %vm427 = vcmp.lt.f32.partialorder %v426, 0.0004427343
        %v428 = vsel %vm427, %v425, %v422
        %v429 = vadd.f32 %v415, 1.0
        %v430 = vlog2.pop %v429
        %v431 = vmul.f32 %v430, 0.6931472
        %v432 = vmul.f32 -0.5, %v415
        %v433 = vadd.f32 %v432, 1.0
        %v434 = vmul.f32 %v433, %v415
        %v435 = vand.u32 2147483647, %v415
        %vm436 = vcmp.lt.f32.partialorder %v435, 0.0004427343
        %v437 = vsel %vm436, %v434, %v431
        %v438 = vadd.f32 %v417, 1.0
        %v439 = vlog2.pop %v438
        %v440 = vmul.f32 %v439, 0.6931472
        %v441 = vmul.f32 -0.5, %v417
        %v442 = vadd.f32 %v441, 1.0
        %v443 = vmul.f32 %v442, %v417
        %v444 = vand.u32 2147483647, %v417
        %vm445 = vcmp.lt.f32.partialorder %v444, 0.0004427343
        %v446 = vsel %vm445, %v443, %v440
        %v447 = vadd.f32 %v419, 1.0
        %v448 = vlog2.pop %v447
        %v449 = vmul.f32 %v448, 0.6931472
        %v450 = vmul.f32 -0.5, %v419
        %v451 = vadd.f32 %v450, 1.0
        %v452 = vmul.f32 %v451, %v419
        %v453 = vand.u32 2147483647, %v419
        %vm454 = vcmp.lt.f32.partialorder %v453, 0.0004427343
        %v455 = vsel %vm454, %v452, %v449
        %v456 = vsel %vm408, %v398, %v428
        %v457 = vsel %vm409, %v400, %v437
        %v458 = vsel %vm410, %v404, %v446
        %v459 = vsel %vm411, %v406, %v455
        %v460 = vld [vmem:[%s3] sm:$0xff]
        %v461 = vld [vmem:[%s3 + $0x8] sm:$0xff]
        %v462 = vld [vmem:[%s3 + $0x10] sm:$0xff]
        %v463 = vld [vmem:[%s3 + $0x18] sm:$0xff]
        %v464 = vld [vmem:[%s3 + $0x20] sm:$0xff]
        %v465 = vld [vmem:[%s3 + $0x28] sm:$0xff]
        %v466 = vld [vmem:[%s3 + $0x30] sm:$0xff]
        %v467 = vld [vmem:[%s3 + $0x38] sm:$0xff]
        %v468 = vld [vmem:[%s3 + $0x40] sm:$0xff]
        %v469 = vld [vmem:[%s3 + $0x48] sm:$0xff]
        %v470 = vld [vmem:[%s3 + $0x50] sm:$0xff]
        %v471 = vld [vmem:[%s3 + $0x58] sm:$0xff]
        %v472 = vld [vmem:[%s3 + $0x60] sm:$0xff]
        %v473 = vld [vmem:[%s3 + $0x68] sm:$0xff]
        %v474 = vld [vmem:[%s3 + $0x70] sm:$0xff]
        %v475 = vld [vmem:[%s3 + $0x78] sm:$0xff]
        %v476 = vld [vmem:[%s3 + $0x80] sm:$0xff]
        %v477 = vld [vmem:[%s3 + $0x88] sm:$0xff]
        %v478 = vld [vmem:[%s3 + $0x90] sm:$0xff]
        %v479 = vld [vmem:[%s3 + $0x98] sm:$0xff]
        %v480 = vld [vmem:[%s3 + $0xa0] sm:$0xff]
        %v481 = vld [vmem:[%s3 + $0xa8] sm:$0xff]
        %v482 = vld [vmem:[%s3 + $0xb0] sm:$0xff]
        %v483 = vld [vmem:[%s3 + $0xb8] sm:$0xff]
        %v484 = vld [vmem:[%s3 + $0xc0] sm:$0xff]
        %v485 = vld [vmem:[%s3 + $0xc8] sm:$0xff]
        %v486 = vld [vmem:[%s3 + $0xd0] sm:$0xff]
        %v487 = vld [vmem:[%s3 + $0xd8] sm:$0xff]
        %v488 = vld [vmem:[%s3 + $0xe0] sm:$0xff]
        %v489 = vld [vmem:[%s3 + $0xe8] sm:$0xff]
        %v490 = vld [vmem:[%s3 + $0xf0] sm:$0xff]
        %v491 = vld [vmem:[%s3 + $0xf8] sm:$0xff]
        %v492 = vld [vmem:[%s3 + $0x100] sm:$0xff]
        %v493 = vld [vmem:[%s3 + $0x108] sm:$0xff]
        %v494 = vld [vmem:[%s3 + $0x110] sm:$0xff]
        %v495 = vld [vmem:[%s3 + $0x118] sm:$0xff]
        %v496 = vld [vmem:[%s3 + $0x120] sm:$0xff]
        %v497 = vld [vmem:[%s3 + $0x128] sm:$0xff]
        %v498 = vld [vmem:[%s3 + $0x130] sm:$0xff]
        %v499 = vld [vmem:[%s3 + $0x138] sm:$0xff]
        %v500 = vld [vmem:[%s3 + $0x140] sm:$0xff]
        %v501 = vld [vmem:[%s3 + $0x148] sm:$0xff]
        %v502 = vld [vmem:[%s3 + $0x150] sm:$0xff]
        %v503 = vld [vmem:[%s3 + $0x158] sm:$0xff]
        %v504 = vld [vmem:[%s3 + $0x160] sm:$0xff]
        %v505 = vld [vmem:[%s3 + $0x168] sm:$0xff]
        %v506 = vld [vmem:[%s3 + $0x170] sm:$0xff]
        %v507 = vld [vmem:[%s3 + $0x178] sm:$0xff]
        %v508 = vld [vmem:[%s3 + $0x180] sm:$0xff]
        %v509 = vld [vmem:[%s3 + $0x188] sm:$0xff]
        %v510 = vld [vmem:[%s3 + $0x190] sm:$0xff]
        %v511 = vld [vmem:[%s3 + $0x198] sm:$0xff]
        %v512 = vld [vmem:[%s3 + $0x1a0] sm:$0xff]
        %v513 = vld [vmem:[%s3 + $0x1a8] sm:$0xff]
        %v514 = vld [vmem:[%s3 + $0x1b0] sm:$0xff]
        %v515 = vld [vmem:[%s3 + $0x1b8] sm:$0xff]
        %v516 = vld [vmem:[%s3 + $0x1c0] sm:$0xff]
        %v517 = vld [vmem:[%s3 + $0x1c8] sm:$0xff]
        %v518 = vld [vmem:[%s3 + $0x1d0] sm:$0xff]
        %v519 = vld [vmem:[%s3 + $0x1d8] sm:$0xff]
        %v520 = vld [vmem:[%s3 + $0x1e0] sm:$0xff]
        %v521 = vld [vmem:[%s3 + $0x1e8] sm:$0xff]
        %v522 = vld [vmem:[%s3 + $0x1f0] sm:$0xff]
        %v523 = vld [vmem:[%s3 + $0x1f8] sm:$0xff]
        %v524 = vld [vmem:[%s4] sm:$0x3]
        %v526 = vlaneseq
        %v527 = vshrl.u32 %v526, 7
        %v528 = vsub.s32 0, %v527
        %v529 = vrot.slane %v524, %v528
        %v530 = vlaneseq
        %v531 = vshrl.u32 %v530, 7
        %v532 = vsub.s32 1, %v531
        %v533 = vrot.slane %v524, %v532
        %536 = vmatprep.subr.mxu0 %v461
        %537 = vmatpush1.msra.mxu0 %v460
        %538 = vmatprep.subr.mxu0 %v463
        %539 = vmatpush1.msra.mxu0 %v462
        %540 = vmatprep.subr.mxu0 %v465
        %541 = vmatpush1.msra.mxu0 %v464
        %542 = vmatprep.subr.mxu0 %v467
        %543 = vmatpush1.msra.mxu0 %v466
        %544 = vmatprep.subr.mxu0 %v469
        %545 = vmatpush1.msra.mxu0 %v468
        %546 = vmatprep.subr.mxu0 %v471
        %547 = vmatpush1.msra.mxu0 %v470
        %548 = vmatprep.subr.mxu0 %v473
        %549 = vmatpush1.msra.mxu0 %v472
        %550 = vmatprep.subr.mxu0 %v475
        %551 = vmatpush1.msra.mxu0 %v474
        %552 = vmatprep.subr.mxu0 %v477
        %553 = vmatpush1.msra.mxu0 %v476
        %554 = vmatprep.subr.mxu0 %v479
        %555 = vmatpush1.msra.mxu0 %v478
        %556 = vmatprep.subr.mxu0 %v481
        %557 = vmatpush1.msra.mxu0 %v480
        %558 = vmatprep.subr.mxu0 %v483
        %559 = vmatpush1.msra.mxu0 %v482
        %560 = vmatprep.subr.mxu0 %v485
        %561 = vmatpush1.msra.mxu0 %v484
        %562 = vmatprep.subr.mxu0 %v487
        %563 = vmatpush1.msra.mxu0 %v486
        %564 = vmatprep.subr.mxu0 %v489
        %565 = vmatpush1.msra.mxu0 %v488
        %566 = vmatprep.subr.mxu0 %v491
        %567 = vmatpush1.msra.mxu0 %v490
        %568 = vmatprep.subr.mxu0 %v493
        %569 = vmatpush1.msra.mxu0 %v492
        %570 = vmatprep.subr.mxu0 %v495
        %571 = vmatpush1.msra.mxu0 %v494
        %572 = vmatprep.subr.mxu0 %v497
        %573 = vmatpush1.msra.mxu0 %v496
        %574 = vmatprep.subr.mxu0 %v499
        %575 = vmatpush1.msra.mxu0 %v498
        %576 = vmatprep.subr.mxu0 %v501
        %577 = vmatpush1.msra.mxu0 %v500
        %578 = vmatprep.subr.mxu0 %v503
        %579 = vmatpush1.msra.mxu0 %v502
        %580 = vmatprep.subr.mxu0 %v505
        %581 = vmatpush1.msra.mxu0 %v504
        %582 = vmatprep.subr.mxu0 %v507
        %583 = vmatpush1.msra.mxu0 %v506
        %584 = vmatprep.subr.mxu0 %v509
        %585 = vmatpush1.msra.mxu0 %v508
        %586 = vmatprep.subr.mxu0 %v511
        %587 = vmatpush1.msra.mxu0 %v510
        %588 = vmatprep.subr.mxu0 %v513
        %589 = vmatpush1.msra.mxu0 %v512
        %590 = vmatprep.subr.mxu0 %v515
        %591 = vmatpush1.msra.mxu0 %v514
        %592 = vmatprep.subr.mxu0 %v517
        %593 = vmatpush1.msra.mxu0 %v516
        %594 = vmatprep.subr.mxu0 %v519
        %595 = vmatpush1.msra.mxu0 %v518
        %596 = vmatprep.subr.mxu0 %v521
        %597 = vmatpush1.msra.mxu0 %v520
        %598 = vmatprep.subr.mxu0 %v523
        %599 = vmatpush1.msra.mxu0 %v522
        %600 = vmatprep.mubr.f32.mxu0 %v457
        %601 = vmatmul.mubr.f32.gmra.mrb[0].mxu0 %v456
        %v602 = vpop.f32.mrb[0].mxu0
        %v603 = vadd.f32 %v529, %v602
        %v604 = vpop.f32.mrb[0].mxu0
        %v605 = vadd.f32 %v533, %v604
        %606 = vmatprep.mubr.f32.mxu0 %v459
        %607 = vmatmul.mubr.f32.gmra.mrb[0].mxu0 %v458
        %v608 = vpop.f32.mrb[0].mxu0
        %v609 = vadd.f32 %v529, %v608
        %v610 = vpop.f32.mrb[0].mxu0
        %v611 = vadd.f32 %v533, %v610
        %612 = vdwg.mxu0
        %vm613 = vcmp.gt.f32.partialorder %v603, 20.0
        %vm614 = vcmp.gt.f32.partialorder %v605, 20.0
        %vm615 = vcmp.gt.f32.partialorder %v609, 20.0
        %vm616 = vcmp.gt.f32.partialorder %v611, 20.0
        %v617 = vmul.f32 %v603, 1.442695
        %v618 = vpow.pop %v617
        %v619 = vmul.f32 %v605, 1.442695
        %v620 = vpow.pop %v619
        %v621 = vmul.f32 %v609, 1.442695
        %v622 = vpow.pop %v621
        %v623 = vmul.f32 %v611, 1.442695
        %v624 = vpow.pop %v623
        %v625 = vadd.f32 %v618, 1.0
        %v626 = vlog2.pop %v625
        %v627 = vmul.f32 %v626, 0.6931472
        %v628 = vmul.f32 -0.5, %v618
        %v629 = vadd.f32 %v628, 1.0
        %v630 = vmul.f32 %v629, %v618
        %v631 = vand.u32 2147483647, %v618
        %vm632 = vcmp.lt.f32.partialorder %v631, 0.0004427343
        %v633 = vsel %vm632, %v630, %v627
        %v634 = vadd.f32 %v620, 1.0
        %v635 = vlog2.pop %v634
        %v636 = vmul.f32 %v635, 0.6931472
        %v637 = vmul.f32 -0.5, %v620
        %v638 = vadd.f32 %v637, 1.0
        %v639 = vmul.f32 %v638, %v620
        %v640 = vand.u32 2147483647, %v620
        %vm641 = vcmp.lt.f32.partialorder %v640, 0.0004427343
        %v642 = vsel %vm641, %v639, %v636
        %v643 = vadd.f32 %v622, 1.0
        %v644 = vlog2.pop %v643
        %v645 = vmul.f32 %v644, 0.6931472
        %v646 = vmul.f32 -0.5, %v622
        %v647 = vadd.f32 %v646, 1.0
        %v648 = vmul.f32 %v647, %v622
        %v649 = vand.u32 2147483647, %v622
        %vm650 = vcmp.lt.f32.partialorder %v649, 0.0004427343
        %v651 = vsel %vm650, %v648, %v645
        %v652 = vadd.f32 %v624, 1.0
        %v653 = vlog2.pop %v652
        %v654 = vmul.f32 %v653, 0.6931472
        %v655 = vmul.f32 -0.5, %v624
        %v656 = vadd.f32 %v655, 1.0
        %v657 = vmul.f32 %v656, %v624
        %v658 = vand.u32 2147483647, %v624
        %vm659 = vcmp.lt.f32.partialorder %v658, 0.0004427343
        %v660 = vsel %vm659, %v657, %v654
        %v661 = vsel %vm613, %v603, %v633
        %v662 = vsel %vm614, %v605, %v642
        %v663 = vsel %vm615, %v609, %v651
        %v664 = vsel %vm616, %v611, %v660
        %v665 = vld [vmem:[%s5] sm:$0x3]
        %v667 = vlaneseq
        %v668 = vshrl.u32 %v667, 7
        %v669 = vsub.s32 0, %v668
        %v670 = vrot.slane %v665, %v669
        %v671 = vlaneseq
        %v672 = vshrl.u32 %v671, 7
        %v673 = vsub.s32 1, %v672
        %v674 = vrot.slane %v665, %v673
        %v677 = vmul.f32 %v661, %v670
        %v678 = vmul.f32 %v662, %v674
        %v679 = vmul.f32 %v663, %v670
        %v680 = vmul.f32 %v664, %v674
        %v681 = vadd.f32 %v677, %v678
        %682 = vadd.xlane.f32.xlu0 %v681
        %v683 = vpop.xlane.xlu0 %682
        %v684 = vadd.f32 %v679, %v680
        %685 = vadd.xlane.f32.xlu0 %v684
        %v686 = vpop.xlane.xlu0 %685
        %v687 = vld [vmem:[#allocation2] sm:$0x1]
        %v689 = vlaneseq
        %v690 = vshrl.u32 %v689, 7
        %v691 = vsub.s32 0, %v690
        %v692 = vrot.slane %v687, %v691
        %v694 = vadd.f32 %v683, %v692
        %v695 = vadd.f32 %v686, %v692
        %vm696 = vcmask 7168
        %697 = vst.msk [vmem:[%s282] sm:$0xff] %vm696, %v694
        %698 = vst.msk [vmem:[%s282 + $0x8] sm:$0xff] %vm696, %v695
        %s699 = sand.u32 %s180, 1
        %s700 = sand.u32 %s180, 1
        %s701 = smul.addr %s700, 16
        %s702 = scalar_lea.vmem [#allocation3], %s701
        // Predicated region
        $region49: #{lipschitz_function_forward.1} parent=47 // pred_check
          %p703 = pneg %p190
        $region50: #{lipschitz_function_forward.1} parent=47 // pred_check_branch
          %705 = sbr.rel (%p703) target = $region52
        $region51: #{lipschitz_function_forward.1} parent=47 // pred_region
          %s706 = smul.u32 2, %s20
          %s707 = ssub.s32 3, %s706
          %p708 = scmp.lt.s32.totalorder %s707, 2
          %s709 = scalar_select %p708, %s707, 2
          %s710 = smul.u32 128, %s709
          %p711 = scmp.ne.s32.totalorder 0, %s710
          %s712 = smul.addr %s706, 8
          %s713 = scalar_lea.vmem %s7, %s712
          // Predicated region
          $region53: #{lipschitz_function_forward.1} parent=51 // pred_check
            %p714 = pneg %p711
          $region54: #{lipschitz_function_forward.1} parent=51 // pred_check_branch
            %716 = sbr.rel (%p714) target = $region56
          $region55: #{lipschitz_function_forward.1} parent=51 // pred_region
            // Predicated region
            $region57: #{lipschitz_function_forward.1} parent=55 // pred_check
              _
            $region58: #{lipschitz_function_forward.1} parent=55 // pred_check_branch
              %718 = sbr.rel (0) target = $region60
            $region59: #{lipschitz_function_forward.1} parent=55 // pred_region
              // Predicated region
              $region79: #{lipschitz_function_forward.1} parent=59 // pred_check
                _
              $region80: #{lipschitz_function_forward.1} parent=59 // pred_check_branch
                %769 = sbr.rel (0) target = $region82
              $region81: #{lipschitz_function_forward.1} parent=59 // pred_region
                %s770 = sshrl.u32 %s709, 1
                // While loop
                $region83: #{lipschitz_function_forward.1} parent=81 // loop_pre_header
                  _
                $region84: #{lipschitz_function_forward.1} parent=81 // loop_header
                  %s772 = sphi 0, %s774
                  %p773 = scmp.ge.s32.totalorder %s772, %s770
                  %s777 = sphi 0, %s786
                  %s778 = sphi %s702, %s789
                  %s779 = sphi %s713, %s790
                $region85: #{lipschitz_function_forward.1} parent=81 // loop_header_branch
                  %776 = sbr.rel (%p773) target = $region89
                $region86: #{lipschitz_function_forward.1} parent=81 // loop_body
                  %v780 = vld [vmem:[%s778] sm:$0xff]
                  %781 = vst [vmem:[%s779] sm:$0xff] %v780
                  %v782 = vld [vmem:[%s778 + $0x8] sm:$0xff]
                  %783 = vst [vmem:[%s779 + $0x8] sm:$0xff] %v782
                  %s784 = sadd.s32 1, %s777
                  %p785 = scmp.ge.s32.totalorder %s784, %s770
                  %s786 = scalar_select %p785, 0, %s784
                  %s787 = smul.u32 %s786, 16
                  %s788 = smul.u32 %s786, 16
                  %s789 = scalar_lea.vmem %s702, %s787 [#allocation3]
                  %s790 = scalar_lea.vmem %s713, %s788
                $region87: #{lipschitz_function_forward.1} parent=81 // loop_footer
                  %s774 = sadd.s32 %s772, 1
                $region88: #{lipschitz_function_forward.1} parent=81 // loop_footer_branch
                  %771 = sbr.rel target = $region84
                $region89: #{lipschitz_function_forward.1} parent=81 // loop_exit
                  _
                %s791 = sshrl.u32 %s709, 1
                %s792 = sand.u32 %s709, 1
                %s793 = smul.u32 %s791, 2
                %s794 = smul.u32 8, %s793
                %s795 = scalar_lea.vmem %s702, %s794 [#allocation3]
                %s796 = smul.u32 8, %s793
                %s797 = scalar_lea.vmem %s713, %s796
                // While loop
                $region90: #{lipschitz_function_forward.1} parent=81 // loop_pre_header
                  _
                $region91: #{lipschitz_function_forward.1} parent=81 // loop_header
                  %s799 = sphi 0, %s801
                  %p800 = scmp.ge.s32.totalorder %s799, %s792
                  %s804 = sphi 0, %s811
                  %s805 = sphi %s795, %s814
                  %s806 = sphi %s797, %s815
                $region92: #{lipschitz_function_forward.1} parent=81 // loop_header_branch
                  %803 = sbr.rel (%p800) target = $region96
                $region93: #{lipschitz_function_forward.1} parent=81 // loop_body
                  %v807 = vld [vmem:[%s805] sm:$0xff]
                  %808 = vst [vmem:[%s806] sm:$0xff] %v807
                  %s809 = sadd.s32 1, %s804
                  %p810 = scmp.ge.s32.totalorder %s809, %s792
                  %s811 = scalar_select %p810, 0, %s809
                  %s812 = smul.u32 %s811, 8
                  %s813 = smul.u32 %s811, 8
                  %s814 = scalar_lea.vmem %s795, %s812 [#allocation3]
                  %s815 = scalar_lea.vmem %s797, %s813
                $region94: #{lipschitz_function_forward.1} parent=81 // loop_footer
                  %s801 = sadd.s32 %s799, 1
                $region95: #{lipschitz_function_forward.1} parent=81 // loop_footer_branch
                  %798 = sbr.rel target = $region91
                $region96: #{lipschitz_function_forward.1} parent=81 // loop_exit
                  _
              $region82: #{lipschitz_function_forward.1} parent=59 // pred_fallthru
                _
              // Predicated region
              $region97: #{lipschitz_function_forward.1} parent=59 // pred_check
                _
              $region98: #{lipschitz_function_forward.1} parent=59 // pred_check_branch
                %817 = sbr.rel target = $region100
              $region99: #{lipschitz_function_forward.1} parent=59 // pred_region
                _
              $region100: #{lipschitz_function_forward.1} parent=59 // pred_fallthru
                _
            $region60: #{lipschitz_function_forward.1} parent=55 // pred_fallthru
              _
            // Predicated region
            $region61: #{lipschitz_function_forward.1} parent=55 // pred_check
              _
            $region62: #{lipschitz_function_forward.1} parent=55 // pred_check_branch
              %720 = sbr.rel target = $region64
            $region63: #{lipschitz_function_forward.1} parent=55 // pred_region
              %s722 = sshrl.u32 %s709, 1
              // While loop
              $region65: #{lipschitz_function_forward.1} parent=63 // loop_pre_header
                _
              $region66: #{lipschitz_function_forward.1} parent=63 // loop_header
                %s724 = sphi 0, %s726
                %p725 = scmp.ge.s32.totalorder %s724, %s722
                %s729 = sphi 0, %s738
                %s730 = sphi %s702, %s741
                %s731 = sphi %s713, %s742
              $region67: #{lipschitz_function_forward.1} parent=63 // loop_header_branch
                %728 = sbr.rel (%p725) target = $region71
              $region68: #{lipschitz_function_forward.1} parent=63 // loop_body
                %v732 = vld [vmem:[%s730] sm:$0xff]
                %733 = vst [vmem:[%s731] sm:$0xff] %v732
                %v734 = vld [vmem:[%s730 + $0x8] sm:$0xff]
                %735 = vst [vmem:[%s731 + $0x8] sm:$0xff] %v734
                %s736 = sadd.s32 1, %s729
                %p737 = scmp.ge.s32.totalorder %s736, %s722
                %s738 = scalar_select %p737, 0, %s736
                %s739 = smul.u32 %s738, 16
                %s740 = smul.u32 %s738, 16
                %s741 = scalar_lea.vmem %s702, %s739 [#allocation3]
                %s742 = scalar_lea.vmem %s713, %s740
              $region69: #{lipschitz_function_forward.1} parent=63 // loop_footer
                %s726 = sadd.s32 %s724, 1
              $region70: #{lipschitz_function_forward.1} parent=63 // loop_footer_branch
                %723 = sbr.rel target = $region66
              $region71: #{lipschitz_function_forward.1} parent=63 // loop_exit
                _
              %s743 = sshrl.u32 %s709, 1
              %s744 = sand.u32 %s709, 1
              %s745 = smul.u32 %s743, 2
              %s746 = smul.u32 8, %s745
              %s747 = scalar_lea.vmem %s702, %s746 [#allocation3]
              %s748 = smul.u32 8, %s745
              %s749 = scalar_lea.vmem %s713, %s748
              // While loop
              $region72: #{lipschitz_function_forward.1} parent=63 // loop_pre_header
                _
              $region73: #{lipschitz_function_forward.1} parent=63 // loop_header
                %s751 = sphi 0, %s753
                %p752 = scmp.ge.s32.totalorder %s751, %s744
                %s756 = sphi 0, %s763
                %s757 = sphi %s747, %s766
                %s758 = sphi %s749, %s767
              $region74: #{lipschitz_function_forward.1} parent=63 // loop_header_branch
                %755 = sbr.rel (%p752) target = $region78
              $region75: #{lipschitz_function_forward.1} parent=63 // loop_body
                %v759 = vld [vmem:[%s757] sm:$0xff]
                %760 = vst [vmem:[%s758] sm:$0xff] %v759
                %s761 = sadd.s32 1, %s756
                %p762 = scmp.ge.s32.totalorder %s761, %s744
                %s763 = scalar_select %p762, 0, %s761
                %s764 = smul.u32 %s763, 8
                %s765 = smul.u32 %s763, 8
                %s766 = scalar_lea.vmem %s747, %s764 [#allocation3]
                %s767 = scalar_lea.vmem %s749, %s765
              $region76: #{lipschitz_function_forward.1} parent=63 // loop_footer
                %s753 = sadd.s32 %s751, 1
              $region77: #{lipschitz_function_forward.1} parent=63 // loop_footer_branch
                %750 = sbr.rel target = $region73
              $region78: #{lipschitz_function_forward.1} parent=63 // loop_exit
                _
            $region64: #{lipschitz_function_forward.1} parent=55 // pred_fallthru
              _
          $region56: #{lipschitz_function_forward.1} parent=51 // pred_fallthru
            _
          %818 = vnop
        $region52: #{lipschitz_function_forward.1} parent=47 // pred_fallthru
          _
      $region48: #{lipschitz_function_forward.1} parent=5 // pred_fallthru
        _
      %p819 = scmp.le.s32.totalorder 2, %s15
      // Predicated region
      $region101: #{lipschitz_function_forward.1} parent=5 // pred_check
        %p820 = pneg %p819
      $region102: #{lipschitz_function_forward.1} parent=5 // pred_check_branch
        %822 = sbr.rel (%p820) target = $region104
      $region103: #{lipschitz_function_forward.1} parent=5 // pred_region
        %s823 = ssub.s32 %s15, 2
        // Predicated region
        $region105: #{lipschitz_function_forward.1} parent=103 // pred_check
          %p824 = pneg %p196
        $region106: #{lipschitz_function_forward.1} parent=103 // pred_check_branch
          %826 = sbr.rel (%p824) target = $region108
        $region107: #{lipschitz_function_forward.1} parent=103 // pred_region
          %s827 = sand.u32 %s181, 1
          %s828 = sand.u32 %s181, 1
          %s829 = smul.addr %s828, 16
          %s830 = scalar_lea.vmem [#allocation3], %s829
        $region108: #{lipschitz_function_forward.1} parent=103 // pred_fallthru
          _
      $region104: #{lipschitz_function_forward.1} parent=5 // pred_fallthru
        _
    $region6: #{lipschitz_function_forward.1} parent=1 // loop_footer
      %s19 = sadd.s32 1, %s15
    $region7: #{lipschitz_function_forward.1} parent=1 // loop_footer_branch
      %14 = sbr.rel target = $region3
    $region8: #{lipschitz_function_forward.1} parent=1 // loop_exit
      _

</llo_original>
